<compile_context>
chip_gen: v5e
topology: v5e:2x2
jax: 0.10.0
libtpu: 0.0.40
codegen_flags: <defaults>
</compile_context>

<pallas_src>
import functools

import numpy as np
import jax
import jax.numpy as jnp
from jax.experimental import pallas as pl
from jax.experimental.pallas import tpu as pltpu


# --------------------------------------------------------------------------- #
# VMEM budgeting & tile selection
# --------------------------------------------------------------------------- #
def _vmem_budget_bytes():
    cap = 64 * 1024 * 1024                      # conservative default (v7x)
    try:
        info = pltpu.get_tpu_info()
        cap = int(getattr(info, "vmem_capacity_bytes", cap)) or cap
    except Exception:
        pass
    # ~75% of physical VMEM, capped at 96 MiB:
    #   v7x (64 MiB VMEM)  -> 48 MiB budget
    #   v5e/v6e (128 MiB)  -> 96 MiB budget
    return min(cap * 3 // 4, 96 * 1024 * 1024)


def _footprint_bytes(tm, tn, D):
    """Double-buffered VMEM footprint of the main kernel (bytes)."""
    xi = 2 * tm * D * 2            # bf16 row tile, double buffered
    xj = 2 * tn * D * 2            # bf16 column tile
    mk = 2 * tm * tn * 1           # int8 sames tile
    do = 2 * tm * tn * 2           # bf16 dist output tile
    st = 2 * tm * 128 * 4          # f32 stats slab
    sc = 3 * tm * 128 * 4          # (tm,1) f32 scratch (lane-padded worst case)
    return xi + xj + mk + do + st + sc


def _pick_tiles(B, D, budget):
    # Lane dim of a block must be a multiple of 128 or the full array dim.
    tn_c = [t for t in (1024, 512, 256, 128) if t <= B and B % t == 0] or [B]
    # 256-multiples first (v6e/v7x 256x256 MXU), 128 floor is fine for v5e.
    tm_c = [t for t in (512, 256, 128, 64, 32, 16, 8)
            if t <= B and B % t == 0] or [B]
    # Prefer >=2 row tiles so the "parallel" axis can shard across the 2 TCs.
    tm_pref = [t for t in tm_c if B // t >= 2] or tm_c
    for tm in tm_pref:
        for tn in tn_c:
            if _footprint_bytes(tm, tn, D) <= budget:
                return tm, tn
    return tm_pref[-1], tn_c[-1]


def _pick_norm_tile(B, D, budget):
    for t in (512, 256, 128, 64, 32, 16, 8):
        if B % t == 0 and 2 * t * D * (4 + 2) <= budget:
            return t
    return B


# --------------------------------------------------------------------------- #
# Pallas kernels
# --------------------------------------------------------------------------- #
def _normalize_kernel(x_ref, o_ref):
    """L2 row-normalize (f32 rsqrt on the EUP) and emit bf16 rows."""
    x = x_ref[...].astype(jnp.float32)
    inv = jax.lax.rsqrt(jnp.sum(x * x, axis=1, keepdims=True) + 1e-24)
    o_ref[...] = (x * inv).astype(o_ref.dtype)


def _miner_kernel(xi_ref, xj_ref, s_ref, dist_ref, stats_ref,
                  acc_sall, acc_d, acc_sd):
    """One (tm, tn) tile of the cosine-distance matrix + fused row stats."""
    j = pl.program_id(1)
    tm = dist_ref.shape[0]

    @pl.when(j == 0)
    def _():
        acc_sall[...] = jnp.zeros_like(acc_sall)
        acc_d[...] = jnp.zeros_like(acc_d)
        acc_sd[...] = jnp.zeros_like(acc_sd)

    # cosine distance tile: -(xn_i @ xn_j.T); bf16 MXU inputs, f32 accumulation
    d32 = -jax.lax.dot_general(xi_ref[...], xj_ref[...],
                               (((1,), (1,)), ((), ())),
                               preferred_element_type=jnp.float32)
    d_bf16 = d32.astype(jnp.bfloat16)
    dist_ref[...] = d_bf16                         # bf16 store: halves HBM writes
    d = d_bf16.astype(jnp.float32)                 # stats see what the host sees

    sall = s_ref[...].astype(jnp.float32)          # precomputed 0/1 label mask
    acc_sall[...] += jnp.sum(sall, axis=1, keepdims=True)
    acc_d[...] += jnp.sum(d, axis=1, keepdims=True)
    acc_sd[...] += jnp.sum(sall * d, axis=1, keepdims=True)

    # lane-dense (tm, 128) stats slab, written once on the last column tile
    @pl.when(j == pl.num_programs(1) - 1)
    def _():
        col = jax.lax.broadcasted_iota(jnp.int32, (tm, 128), 1)
        stats_ref[...] = (jnp.where(col == 0, acc_sall[...], 0.0)
                          + jnp.where(col == 1, acc_d[...], 0.0)
                          + jnp.where(col == 2, acc_sd[...], 0.0))


# --------------------------------------------------------------------------- #
# Device wrapper
# --------------------------------------------------------------------------- #
@functools.partial(jax.jit, static_argnames=("tm", "tn"))
def _miner_device(logits, labels, tm=None, tn=None):
    logits = jnp.asarray(logits, jnp.float32)
    labels = jnp.asarray(labels, jnp.float32)
    B, D = logits.shape
    budget = _vmem_budget_bytes()

    # 1) one-pass row normalization -> bf16 (removes per-tile rsqrt/mul/cast
    #    from the hot loop and halves the logits read stream).
    tr = _pick_norm_tile(B, D, budget)
    xn = pl.pallas_call(
        _normalize_kernel,
        out_shape=jax.ShapeDtypeStruct((B, D), jnp.bfloat16),
        grid=(B // tr,),
        in_specs=[pl.BlockSpec((tr, D), lambda i: (i, 0))],
        out_specs=pl.BlockSpec((tr, D), lambda i: (i, 0)),
        compiler_params=pltpu.CompilerParams(
            dimension_semantics=("parallel",)),
    )(logits)

    # 2) hoisted label co-occurrence mask (tiny exact f32 XLA matmul, int8
    #    result): removes the second MXU push per tile from the hot loop.
    g = jnp.dot(labels, labels.T, precision=jax.lax.Precision.HIGHEST,
                preferred_element_type=jnp.float32)
    sames = (g > 0.0).astype(jnp.int8)

    # 3) tiled hot kernel
    if tm is None or tn is None:
        ptm, ptn = _pick_tiles(B, D, budget)
        tm = ptm if tm is None else tm
        tn = ptn if tn is None else tn
    assert B % tm == 0 and B % tn == 0, "tile sizes must divide the batch"
    vmem_limit = int(min(max(budget, _footprint_bytes(tm, tn, D) + (8 << 20)),
                         100 * 1024 * 1024))

    # TODO(synk): on v5e, pipeline_mode=pl.Buffered(3) on the column-stream
    # specs can hide exposed DMA behind MXU + stores; left at the default here.
    dist, stats = pl.pallas_call(
        _miner_kernel,
        out_shape=(
            jax.ShapeDtypeStruct((B, B), jnp.bfloat16),    # cosine distances
            jax.ShapeDtypeStruct((B, 128), jnp.float32),   # fused row stats
        ),
        grid=(B // tm, B // tn),
        in_specs=[
            pl.BlockSpec((tm, D), lambda i, j: (i, 0)),    # normalized rows i
            pl.BlockSpec((tn, D), lambda i, j: (j, 0)),    # normalized rows j
            pl.BlockSpec((tm, tn), lambda i, j: (i, j)),   # sames_all tile
        ],
        out_specs=(
            pl.BlockSpec((tm, tn), lambda i, j: (i, j)),
            pl.BlockSpec((tm, 128), lambda i, j: (i, 0)),  # written at last j
        ),
        scratch_shapes=[
            pltpu.VMEM((tm, 1), jnp.float32),   # sum sames_all
            pltpu.VMEM((tm, 1), jnp.float32),   # sum dist
            pltpu.VMEM((tm, 1), jnp.float32),   # sum sames_all * dist
        ],
        compiler_params=pltpu.CompilerParams(
            dimension_semantics=("parallel", "arbitrary"),
            vmem_limit_bytes=vmem_limit,
        ),
        cost_estimate=pl.CostEstimate(
            flops=int(2 * B * B * D),
            transcendentals=0,
            bytes_accessed=int(2 * B * D * (B // tm + B // tn)
                               + 3 * B * B + 512 * B),
        ),
    )(xn, xn, sames)
    return dist, sames, stats


# --------------------------------------------------------------------------- #
# Module wrapper (host side: epsilon update + quadruplet extraction)
# --------------------------------------------------------------------------- #
class AdaQuadrupletMiner:
    """JAX/Pallas port of the PyTorch AdaQuadrupletMiner (cosine distance)."""

    def __init__(self, type_of_distance="cosine", type_of_quadruplets="hard",
                 what_is_hard="all", epsilon=0.1, k_delta=2.0, tm=None, tn=None):
        assert type_of_distance == "cosine", "only cosine distance implemented"
        self.type_of_distance = type_of_distance
        self.type_of_quadruplets = type_of_quadruplets
        self.what_is_hard = what_is_hard
        self.epsilon = float(epsilon)
        self.k_delta = float(k_delta)
        self.tm = tm
        self.tn = tn

    def __call__(self, logits, labels):
        dist_j, sames_j, stats_j = _miner_device(jnp.asarray(logits),
                                                 jnp.asarray(labels),
                                                 tm=self.tm, tn=self.tn)
        jax.block_until_ready((dist_j, sames_j, stats_j))
        dist = np.asarray(jax.device_get(dist_j)).astype(np.float32)    # (B,B)
        sames_all = np.asarray(jax.device_get(sames_j)) != 0            # (B,B)
        stats = np.asarray(jax.device_get(stats_j)).astype(np.float64)  # (B,128)
        B = dist.shape[0]

        # factorized per-row stats (+ exact host-side diagonal correction)
        sum_sall, sum_d, sum_sd = stats[:, 0], stats[:, 1], stats[:, 2]
        diag_s = sames_all.diagonal().astype(np.float64)
        diag_d = np.diagonal(dist).astype(np.float64)
        S = np.rint(sum_sall - diag_s)            # sames with diag zeroed
        cnt_n = np.rint(B - sum_sall)             # diffs (diag kept, torch order)
        sum_dn = sum_d - sum_sd                   # sum_j diffs * dist
        sum_sj = sum_sd - diag_s * diag_d         # sum_j sames * dist

        # number of (A, P1, P2) triplets per anchor = S*(S-1)/2 (j < k)
        cnt_jk = S * (S - 1.0) * 0.5
        if float(cnt_jk.sum()) == 0.0:
            return None                           # no triplets at all
        n_quad = float(np.sum(cnt_jk * cnt_n))
        if n_quad == 0.0:
            return None                           # triplets but no negatives

        # sum over all quadruplets of (margin1 + margin2), factorized per row
        sum_delta = float(np.sum(2.0 * cnt_jk * sum_dn
                                 - cnt_n * (S - 1.0) * sum_sj))
        # self.update(delta, 'ap_an'):  epsilon = relu(delta.mean() / k_delta)
        self.epsilon = max(sum_delta / (2.0 * n_quad) / self.k_delta, 0.0)
        eps = self.epsilon

        if self.what_is_hard == "one":
            opt = np.logical_or
        elif self.what_is_hard == "all":
            opt = np.logical_and
        else:
            raise NotImplementedError(self.what_is_hard)

        # TODO(synk): dynamic-size nonzero/compaction has no static-shape Pallas
        # equivalent; done host-side, chunked per anchor (no O(B^4) array),
        # preserving torch.where's lexicographic (I, J, K, N) quadruplet order.
        jlt = np.triu(np.ones((B, B), dtype=bool), 1)
        chunks = []
        for i in range(B):
            s = sames_all[i].copy()
            s[i] = False                          # sames.fill_diagonal_(0)
            jj, kk = np.nonzero(s[:, None] & s[None, :] & jlt)
            if jj.size == 0:
                continue
            nn = np.nonzero(~sames_all[i])[0]     # diffs = sames ^ 1 (pre diag)
            if nn.size == 0:
                continue
            d_in = dist[i, nn]
            m1 = d_in[None, :] - dist[i, jj][:, None]     # dist[i,n] - dist[i,j]
            m2 = d_in[None, :] - dist[i, kk][:, None]     # dist[i,n] - dist[i,k]
            if self.type_of_quadruplets == "easy":
                cond = opt(m1 > eps, m2 > eps)
            else:
                cond = opt(m1 <= eps, m2 <= eps)
                if self.type_of_quadruplets == "hard":
                    cond &= opt(m1 <= 0, m2 <= 0)
                elif self.type_of_quadruplets == "semi-hard":
                    cond &= opt(m1 > 0, m2 > 0)
            t_idx, n_idx = np.nonzero(cond)
            if t_idx.size:
                chunks.append(np.stack(
                    [np.full(t_idx.shape, i, dtype=np.int64),
                     jj[t_idx], kk[t_idx], nn[n_idx]], axis=1))
        if not chunks:
            return None
        return np.concatenate(chunks, axis=0).astype(np.int32)


# --------------------------------------------------------------------------- #
# Independent references for the self-test
# --------------------------------------------------------------------------- #
def _numpy_reference_stats(logits, labels, k_delta):
    """f64 reference for dist / sames / diffs / n_quad / epsilon."""
    x = np.asarray(logits, dtype=np.float64)
    lab = np.asarray(labels, dtype=np.float64)
    xn = x / np.maximum(np.linalg.norm(x, axis=1, keepdims=True), 1e-12)
    mat = -(xn @ xn.T)
    sames_all = (lab @ lab.T) > 0
    diffs = ~sames_all
    sames = sames_all.copy()
    np.fill_diagonal(sames, False)
    B = lab.shape[0]
    jlt = np.triu(np.ones((B, B), dtype=bool), 1)
    I, J, K = np.nonzero(sames[:, :, None] & sames[:, None, :] & jlt[None, :, :])
    if I.size == 0:
        return mat, sames, diffs, 0, None
    t_idx, N = np.nonzero(diffs[I])
    if t_idx.size == 0:
        return mat, sames, diffs, 0, None
    I2, J2, K2 = I[t_idx], J[t_idx], K[t_idx]
    m1 = mat[I2, N] - mat[I2, J2]
    m2 = mat[I2, N] - mat[I2, K2]
    delta = np.concatenate([m1, m2])
    eps = max(delta.mean() / k_delta, 0.0)
    return mat, sames, diffs, t_idx.size, eps


def _reference_quadruplets(dist, sames, diffs, eps, type_of_quadruplets, what_is_hard):
    """Literal (torch-style) quadruplet extraction using a given dist / eps."""
    B = dist.shape[0]
    jlt = np.triu(np.ones((B, B), dtype=bool), 1)
    I, J, K = np.nonzero(sames[:, :, None] & sames[:, None, :] & jlt[None, :, :])
    if I.size == 0:
        return None
    t_idx, N = np.nonzero(diffs[I])
    if t_idx.size == 0:
        return None
    I, J, K = I[t_idx], J[t_idx], K[t_idx]
    m1 = dist[I, N] - dist[I, J]
    m2 = dist[I, N] - dist[I, K]
    opt = np.logical_or if what_is_hard == "one" else np.logical_and
    if type_of_quadruplets == "easy":
        cond = opt(m1 > eps, m2 > eps)
    else:
        cond = opt(m1 <= eps, m2 <= eps)
        if type_of_quadruplets == "hard":
            cond &= opt(m1 <= 0, m2 <= 0)
        elif type_of_quadruplets == "semi-hard":
            cond &= opt(m1 > 0, m2 > 0)
    if not cond.any():
        return None
    return np.stack([I[cond], J[cond], K[cond], N[cond]], axis=1)


# --------------------------------------------------------------------------- #
if __name__ == "__main__":
    key = jax.random.PRNGKey(0)
    k1, k2 = jax.random.split(key)

    # ------------------ test 1: full miner path (B = 64) ------------------- #
    B, D, L = 64, 128, 4
    logits = jax.random.normal(k1, (B, D), dtype=jnp.float32)

    # deterministic multi-hot labels guaranteeing quadruplets exist
    labels_np = np.zeros((B, L), dtype=np.float32)
    for idx in range(B):
        labels_np[idx, idx % L] = 1.0
        if idx % 5 == 0:
            labels_np[idx, (idx + 2) % L] = 1.0
    labels = jnp.asarray(labels_np)

    miner = AdaQuadrupletMiner(type_of_distance="cosine",
                               type_of_quadruplets="hard",
                               what_is_hard="all",
                               epsilon=0.1, k_delta=2.0,
                               tm=32)                     # grid = (2, 1)

    quads = miner(logits, labels)

    # --- verify kernel outputs against an independent f64 numpy reference ---
    dist_j, sames_j, stats_j = _miner_device(logits, labels, tm=32, tn=None)
    jax.block_until_ready((dist_j, sames_j, stats_j))
    dist = np.asarray(jax.device_get(dist_j)).astype(np.float32)
    sames_all = np.asarray(jax.device_get(sames_j)) != 0
    stats = np.asarray(jax.device_get(stats_j)).astype(np.float64)
    sum_sall = stats[:, 0]
    diag_s = sames_all.diagonal().astype(np.float64)
    S = np.rint(sum_sall - diag_s)
    cnt_n = np.rint(B - sum_sall)
    sames = sames_all.copy()
    np.fill_diagonal(sames, False)
    diffs = ~sames_all

    ref_mat, ref_sames, ref_diffs, ref_nq, ref_eps = _numpy_reference_stats(
        np.asarray(logits), labels_np, miner.k_delta)

    # bf16 MXU inputs + bf16 store with f32 accumulation -> loose tolerance
    assert np.max(np.abs(dist - ref_mat)) < 3e-2, "distance matrix mismatch"
    assert np.array_equal(sames, ref_sames), "sames mismatch"
    assert np.array_equal(diffs, ref_diffs), "diffs mismatch"
    assert np.array_equal(S.astype(np.int64), ref_sames.sum(1)), "S mismatch"
    assert np.array_equal(cnt_n.astype(np.int64), ref_diffs.sum(1)), "cnt_n mismatch"
    cnt_jk = S * (S - 1.0) * 0.5
    assert int(round(float(np.sum(cnt_jk * cnt_n)))) == ref_nq, "n_quad mismatch"
    if ref_eps is not None:
        assert abs(miner.epsilon - ref_eps) < 2e-2, "epsilon mismatch"

    # chunked per-anchor extraction must match the literal torch-order reference
    ref_quads = _reference_quadruplets(dist, sames, diffs, miner.epsilon,
                                       miner.type_of_quadruplets,
                                       miner.what_is_hard)
    if quads is None:
        assert ref_quads is None, "quadruplet extraction mismatch (None)"
    else:
        assert ref_quads is not None and np.array_equal(
            quads, ref_quads.astype(np.int32)), "quadruplet extraction mismatch"
        assert quads.shape[1] == 4

    # -------- test 2: multi-column-tile accumulation (grid = (4, 2)) -------- #
    B2, D2, L2 = 256, 128, 8
    logits2 = jax.random.normal(k2, (B2, D2), dtype=jnp.float32)
    labels2_np = np.zeros((B2, L2), dtype=np.float32)
    for idx in range(B2):
        labels2_np[idx, idx % L2] = 1.0
        if idx % 7 == 0:
            labels2_np[idx, (idx + 3) % L2] = 1.0
    labels2 = jnp.asarray(labels2_np)

    d2_j, s2_j, st2_j = _miner_device(logits2, labels2, tm=64, tn=128)
    jax.block_until_ready((d2_j, s2_j, st2_j))
    d2 = np.asarray(jax.device_get(d2_j)).astype(np.float64)
    s2 = (np.asarray(jax.device_get(s2_j)) != 0)
    st2 = np.asarray(jax.device_get(st2_j)).astype(np.float64)

    x2 = np.asarray(logits2, dtype=np.float64)
    x2n = x2 / np.maximum(np.linalg.norm(x2, axis=1, keepdims=True), 1e-12)
    ref2 = -(x2n @ x2n.T)
    assert np.max(np.abs(d2 - ref2)) < 3e-2, "dist mismatch (multi-tile)"
    assert np.array_equal(s2, (labels2_np @ labels2_np.T) > 0), "mask mismatch"
    s2f = s2.astype(np.float64)
    assert np.allclose(st2[:, 0], s2f.sum(1), atol=1e-3), "sum sames mismatch"
    assert np.allclose(st2[:, 1], d2.sum(1), atol=1e-3), "sum dist mismatch"
    assert np.allclose(st2[:, 2], (s2f * d2).sum(1), atol=1e-3), "sum s*d mismatch"

    print("KERNEL_OK")
</pallas_src>

<mosaic_0001>
module attributes {stable_mosaic.version = 11 : i64} {
  func.func @_miner_kernel(%arg0: i32, %arg1: i32, %arg2: memref<32x128xbf16, #tpu.memory_space<vmem>>, %arg3: memref<64x128xbf16, #tpu.memory_space<vmem>>, %arg4: memref<32x64xi8, #tpu.memory_space<vmem>>, %arg5: memref<32x64xbf16, #tpu.memory_space<vmem>>, %arg6: memref<32x128xf32, #tpu.memory_space<vmem>>, %arg7: memref<32x1xf32, #tpu.memory_space<vmem>>, %arg8: memref<32x1xf32, #tpu.memory_space<vmem>>, %arg9: memref<32x1xf32, #tpu.memory_space<vmem>>) attributes {dimension_semantics = [#tpu.dimension_semantics<parallel>, #tpu.dimension_semantics<arbitrary>], iteration_bounds = array<i64: 2, 1>, scalar_prefetch = 0 : i64, scratch_operands = 3 : i64, tpu.core_type = #tpu.core_type<tc>, window_params = [{transform_indices = @transform_0, window_bounds = array<i64: 32, 128>}, {transform_indices = @transform_1, window_bounds = array<i64: 64, 128>}, {transform_indices = @transform_2, window_bounds = array<i64: 32, 64>}, {transform_indices = @transform_3, window_bounds = array<i64: 32, 64>}, {transform_indices = @transform_4, window_bounds = array<i64: 32, 128>}]} {
    %c0_i32 = arith.constant 0 : i32
    %0 = arith.cmpi eq, %arg1, %c0_i32 : i32
    %1 = arith.extui %0 : i1 to i32
    %c0_i32_0 = arith.constant 0 : i32
    %2 = arith.cmpi ne, %1, %c0_i32_0 : i32
    scf.if %2 {
      %cst_26 = arith.constant 0.000000e+00 : f32
      %32 = vector.broadcast %cst_26 : f32 to vector<32x1xf32>
      %c0_27 = arith.constant 0 : index
      %c0_28 = arith.constant 0 : index
      %33 = vector.load %arg7[%c0_27, %c0_28] : memref<32x1xf32, #tpu.memory_space<vmem>>, vector<32x1xf32>
      tpu.vector_store %arg7[%c0_27, %c0_28], %32 {strides = array<i32>} : memref<32x1xf32, #tpu.memory_space<vmem>>, vector<32x1xf32>,
      %cst_29 = arith.constant 0.000000e+00 : f32
      %34 = vector.broadcast %cst_29 : f32 to vector<32x1xf32>
      %c0_30 = arith.constant 0 : index
      %c0_31 = arith.constant 0 : index
      %35 = vector.load %arg8[%c0_30, %c0_31] : memref<32x1xf32, #tpu.memory_space<vmem>>, vector<32x1xf32>
      tpu.vector_store %arg8[%c0_30, %c0_31], %34 {strides = array<i32>} : memref<32x1xf32, #tpu.memory_space<vmem>>, vector<32x1xf32>,
      %cst_32 = arith.constant 0.000000e+00 : f32
      %36 = vector.broadcast %cst_32 : f32 to vector<32x1xf32>
      %c0_33 = arith.constant 0 : index
      %c0_34 = arith.constant 0 : index
      %37 = vector.load %arg9[%c0_33, %c0_34] : memref<32x1xf32, #tpu.memory_space<vmem>>, vector<32x1xf32>
      tpu.vector_store %arg9[%c0_33, %c0_34], %36 {strides = array<i32>} : memref<32x1xf32, #tpu.memory_space<vmem>>, vector<32x1xf32>,
    } else {
    }
    %c0 = arith.constant 0 : index
    %c0_1 = arith.constant 0 : index
    %3 = vector.load %arg2[%c0, %c0_1] : memref<32x128xbf16, #tpu.memory_space<vmem>>, vector<32x128xbf16>
    %c0_2 = arith.constant 0 : index
    %c0_3 = arith.constant 0 : index
    %4 = vector.load %arg3[%c0_2, %c0_3] : memref<64x128xbf16, #tpu.memory_space<vmem>>, vector<64x128xbf16>
    %cst = arith.constant dense<0.000000e+00> : vector<32x64xf32>
    %5 = tpu.matmul %3, %4, %cst {dimension_numbers = #tpu.dot_dimension_numbers<[1], [1], [0], [0], [0, 0, 1, 0], [], []>} : vector<32x128xbf16>, vector<64x128xbf16>, vector<32x64xf32> -> vector<32x64xf32>
    %cst_4 = arith.constant 0.000000e+00 : f32
    %6 = vector.broadcast %cst_4 : f32 to vector<32x64xf32>
    %7 = arith.subf %6, %5 : vector<32x64xf32>
    %8 = arith.truncf %7 : vector<32x64xf32> to vector<32x64xbf16>
    %c0_5 = arith.constant 0 : index
    %c0_6 = arith.constant 0 : index
    %9 = vector.load %arg5[%c0_5, %c0_6] : memref<32x64xbf16, #tpu.memory_space<vmem>>, vector<32x64xbf16>
    tpu.vector_store %arg5[%c0_5, %c0_6], %8 {strides = array<i32>} : memref<32x64xbf16, #tpu.memory_space<vmem>>, vector<32x64xbf16>,
    %10 = arith.extf %8 : vector<32x64xbf16> to vector<32x64xf32>
    %c0_7 = arith.constant 0 : index
    %c0_8 = arith.constant 0 : index
    %11 = vector.load %arg4[%c0_7, %c0_8] : memref<32x64xi8, #tpu.memory_space<vmem>>, vector<32x64xi8>
    %12 = arith.sitofp %11 : vector<32x64xi8> to vector<32x64xf32>
    %c0_9 = arith.constant 0 : index
    %c0_10 = arith.constant 0 : index
    %13 = vector.load %arg7[%c0_9, %c0_10] : memref<32x1xf32, #tpu.memory_space<vmem>>, vector<32x1xf32>
    %cst_11 = arith.constant dense<0.000000e+00> : vector<32xf32>
    %14 = vector.multi_reduction <add>, %12, %cst_11 [1] : vector<32x64xf32> to vector<32xf32>
    %15 = vector.shape_cast %14 : vector<32xf32> to vector<32x1xf32>
    %16 = arith.addf %13, %15 : vector<32x1xf32>
    %c0_12 = arith.constant 0 : index
    %c0_13 = arith.constant 0 : index
    %17 = vector.load %arg7[%c0_12, %c0_13] : memref<32x1xf32, #tpu.memory_space<vmem>>, vector<32x1xf32>
    tpu.vector_store %arg7[%c0_12, %c0_13], %16 {strides = array<i32>} : memref<32x1xf32, #tpu.memory_space<vmem>>, vector<32x1xf32>,
    %c0_14 = arith.constant 0 : index
    %c0_15 = arith.constant 0 : index
    %18 = vector.load %arg8[%c0_14, %c0_15] : memref<32x1xf32, #tpu.memory_space<vmem>>, vector<32x1xf32>
    %cst_16 = arith.constant dense<0.000000e+00> : vector<32xf32>
    %19 = vector.multi_reduction <add>, %10, %cst_16 [1] : vector<32x64xf32> to vector<32xf32>
    %20 = vector.shape_cast %19 : vector<32xf32> to vector<32x1xf32>
    %21 = arith.addf %18, %20 : vector<32x1xf32>
    %c0_17 = arith.constant 0 : index
    %c0_18 = arith.constant 0 : index
    %22 = vector.load %arg8[%c0_17, %c0_18] : memref<32x1xf32, #tpu.memory_space<vmem>>, vector<32x1xf32>
    tpu.vector_store %arg8[%c0_17, %c0_18], %21 {strides = array<i32>} : memref<32x1xf32, #tpu.memory_space<vmem>>, vector<32x1xf32>,
    %c0_19 = arith.constant 0 : index
    %c0_20 = arith.constant 0 : index
    %23 = vector.load %arg9[%c0_19, %c0_20] : memref<32x1xf32, #tpu.memory_space<vmem>>, vector<32x1xf32>
    %24 = arith.mulf %12, %10 : vector<32x64xf32>
    %cst_21 = arith.constant dense<0.000000e+00> : vector<32xf32>
    %25 = vector.multi_reduction <add>, %24, %cst_21 [1] : vector<32x64xf32> to vector<32xf32>
    %26 = vector.shape_cast %25 : vector<32xf32> to vector<32x1xf32>
    %27 = arith.addf %23, %26 : vector<32x1xf32>
    %c0_22 = arith.constant 0 : index
    %c0_23 = arith.constant 0 : index
    %28 = vector.load %arg9[%c0_22, %c0_23] : memref<32x1xf32, #tpu.memory_space<vmem>>, vector<32x1xf32>
    tpu.vector_store %arg9[%c0_22, %c0_23], %27 {strides = array<i32>} : memref<32x1xf32, #tpu.memory_space<vmem>>, vector<32x1xf32>,
    %c0_i32_24 = arith.constant 0 : i32
    %29 = arith.cmpi eq, %arg1, %c0_i32_24 : i32
    %30 = arith.extui %29 : i1 to i32
    %c0_i32_25 = arith.constant 0 : i32
    %31 = arith.cmpi ne, %30, %c0_i32_25 : i32
    scf.if %31 {
      %32 = tpu.iota {dimensions = array<i32: 1>} : vector<32x128xi32>
      %c0_i32_26 = arith.constant 0 : i32
      %33 = vector.broadcast %c0_i32_26 : i32 to vector<32x128xi32>
      %34 = arith.cmpi eq, %32, %33 : vector<32x128xi32>
      %c0_27 = arith.constant 0 : index
      %c0_28 = arith.constant 0 : index
      %35 = vector.load %arg7[%c0_27, %c0_28] : memref<32x1xf32, #tpu.memory_space<vmem>>, vector<32x1xf32>
      %cst_29 = arith.constant 0.000000e+00 : f32
      %36 = vector.shape_cast %35 : vector<32x1xf32> to vector<32x1xf32>
      %37 = vector.broadcast %36 : vector<32x1xf32> to vector<32x128xf32>
      %38 = vector.broadcast %cst_29 : f32 to vector<32x128xf32>
      %39 = arith.select %34, %37, %38 : vector<32x128xi1>, vector<32x128xf32>
      %c1_i32 = arith.constant 1 : i32
      %40 = vector.broadcast %c1_i32 : i32 to vector<32x128xi32>
      %41 = arith.cmpi eq, %32, %40 : vector<32x128xi32>
      %c0_30 = arith.constant 0 : index
      %c0_31 = arith.constant 0 : index
      %42 = vector.load %arg8[%c0_30, %c0_31] : memref<32x1xf32, #tpu.memory_space<vmem>>, vector<32x1xf32>
      %cst_32 = arith.constant 0.000000e+00 : f32
      %43 = vector.shape_cast %42 : vector<32x1xf32> to vector<32x1xf32>
      %44 = vector.broadcast %43 : vector<32x1xf32> to vector<32x128xf32>
      %45 = vector.broadcast %cst_32 : f32 to vector<32x128xf32>
      %46 = arith.select %41, %44, %45 : vector<32x128xi1>, vector<32x128xf32>
      %47 = arith.addf %39, %46 : vector<32x128xf32>
      %c2_i32 = arith.constant 2 : i32
      %48 = vector.broadcast %c2_i32 : i32 to vector<32x128xi32>
      %49 = arith.cmpi eq, %32, %48 : vector<32x128xi32>
      %c0_33 = arith.constant 0 : index
      %c0_34 = arith.constant 0 : index
      %50 = vector.load %arg9[%c0_33, %c0_34] : memref<32x1xf32, #tpu.memory_space<vmem>>, vector<32x1xf32>
      %cst_35 = arith.constant 0.000000e+00 : f32
      %51 = vector.shape_cast %50 : vector<32x1xf32> to vector<32x1xf32>
      %52 = vector.broadcast %51 : vector<32x1xf32> to vector<32x128xf32>
      %53 = vector.broadcast %cst_35 : f32 to vector<32x128xf32>
      %54 = arith.select %49, %52, %53 : vector<32x128xi1>, vector<32x128xf32>
      %55 = arith.addf %47, %54 : vector<32x128xf32>
      %c0_36 = arith.constant 0 : index
      %c0_37 = arith.constant 0 : index
      %56 = vector.load %arg6[%c0_36, %c0_37] : memref<32x128xf32, #tpu.memory_space<vmem>>, vector<32x128xf32>
      tpu.vector_store %arg6[%c0_36, %c0_37], %55 {strides = array<i32>} : memref<32x128xf32, #tpu.memory_space<vmem>>, vector<32x128xf32>,
    } else {
    }
    return
  }
  func.func @transform_0(%arg0: i32, %arg1: i32) -> (i32, i32) {
    %c0_i32 = arith.constant 0 : i32
    %c0_i32_0 = arith.constant 0 : i32
    return %arg0, %c0_i32 : i32, i32
  }
  func.func @transform_1(%arg0: i32, %arg1: i32) -> (i32, i32) {
    %c0_i32 = arith.constant 0 : i32
    %c0_i32_0 = arith.constant 0 : i32
    return %arg1, %c0_i32 : i32, i32
  }
  func.func @transform_2(%arg0: i32, %arg1: i32) -> (i32, i32) {
    %c0_i32 = arith.constant 0 : i32
    return %arg0, %arg1 : i32, i32
  }
  func.func @transform_3(%arg0: i32, %arg1: i32) -> (i32, i32) {
    %c0_i32 = arith.constant 0 : i32
    return %arg0, %arg1 : i32, i32
  }
  func.func @transform_4(%arg0: i32, %arg1: i32) -> (i32, i32) {
    %c0_i32 = arith.constant 0 : i32
    %c0_i32_0 = arith.constant 0 : i32
    return %arg0, %c0_i32 : i32, i32
  }
}

module attributes {stable_mosaic.version = 11 : i64} {
  func.func @_normalize_kernel(%arg0: i32, %arg1: memref<64x128xf32, #tpu.memory_space<vmem>>, %arg2: memref<64x128xbf16, #tpu.memory_space<vmem>>) attributes {dimension_semantics = [#tpu.dimension_semantics<parallel>], iteration_bounds = array<i64: 1>, scalar_prefetch = 0 : i64, scratch_operands = 0 : i64, tpu.core_type = #tpu.core_type<tc>, window_params = [{transform_indices = @transform_0, window_bounds = array<i64: 64, 128>}, {transform_indices = @transform_1, window_bounds = array<i64: 64, 128>}]} {
    %c0 = arith.constant 0 : index
    %c0_0 = arith.constant 0 : index
    %0 = vector.load %arg1[%c0, %c0_0] : memref<64x128xf32, #tpu.memory_space<vmem>>, vector<64x128xf32>
    %1 = arith.mulf %0, %0 : vector<64x128xf32>
    %cst = arith.constant dense<0.000000e+00> : vector<64xf32>
    %2 = vector.multi_reduction <add>, %1, %cst [1] : vector<64x128xf32> to vector<64xf32>
    %3 = vector.shape_cast %2 : vector<64xf32> to vector<64x1xf32>
    %cst_1 = arith.constant 1.000000e-24 : f32
    %4 = vector.broadcast %cst_1 : f32 to vector<64x1xf32>
    %5 = arith.addf %3, %4 : vector<64x1xf32>
    %6 = math.rsqrt %5 : vector<64x1xf32>
    %7 = vector.broadcast %6 : vector<64x1xf32> to vector<64x128xf32>
    %8 = arith.mulf %0, %7 : vector<64x128xf32>
    %9 = arith.truncf %8 : vector<64x128xf32> to vector<64x128xbf16>
    %c0_2 = arith.constant 0 : index
    %c0_3 = arith.constant 0 : index
    %10 = vector.load %arg2[%c0_2, %c0_3] : memref<64x128xbf16, #tpu.memory_space<vmem>>, vector<64x128xbf16>
    tpu.vector_store %arg2[%c0_2, %c0_3], %9 {strides = array<i32>} : memref<64x128xbf16, #tpu.memory_space<vmem>>, vector<64x128xbf16>,
    return
  }
  func.func @transform_0(%arg0: i32) -> (i32, i32) {
    %c0_i32 = arith.constant 0 : i32
    %c0_i32_0 = arith.constant 0 : i32
    return %arg0, %c0_i32 : i32, i32
  }
  func.func @transform_1(%arg0: i32) -> (i32, i32) {
    %c0_i32 = arith.constant 0 : i32
    %c0_i32_0 = arith.constant 0 : i32
    return %arg0, %c0_i32 : i32, i32
  }
}

</mosaic_0001>

<llo_original>
// kernel: _miner_device.2
$region0: #{_miner_device.2}
  #allocation0 [shape = 'u32[]', space=smem, size = 0x4, offset = 0x4, fixed_abs, tag = 'smem constant byte address 0x4 - core index']
  #allocation1 [shape = 'u32[72,128]{1,0:T(1,128)}', space=vmem, size = 0x9000, scoped, tag = 'internal scratch']
  %s0 = inlined_call_operand.hbm [shape: f32[64,128], index: 0, kind: input, shape index: {}]
  %s1 = inlined_call_operand.vmem [shape: bf16[64,128], index: 1, kind: output, shape index: {}]
  %s2 = sld [smem:[#allocation0]]
  $region18: #{_miner_device.2} parent=0
    _
  %s4 = ssub.s32 1, %s2
  %s5 = scalar_select 0, %s4, %s2
  $region1: #{_miner_device.2} parent=0
    #allocation2 [shape = 'u8[32768]{0}', space=vmem, size = 0x8000, scoped, tag = 'input window, operand 0, single buffered']
    #allocation3 [shape = 's32[1]{0}', space=sflag, size = 0x4, scoped, tag = 'scoped memory for _miner_device.2']
    %6 = vsyncpa [#allocation3], 0
    // Predicated region
    $region2: #{_miner_device.2} parent=1 // pred_check
      _
    $region3: #{_miner_device.2} parent=1 // pred_check_branch
      %8 = sbr.rel (0) target = $region5
    $region4: #{_miner_device.2} parent=1 // pred_region
      %10 = vsyncadd [#allocation3], 0
      %s11 = sshll.u32 %s0, 4
      %s12 = int_to_ptr.hbm [resolvable:$true] %s11
      %s13 = sshll.u32 [#allocation2], 4
      %s14 = int_to_ptr.vmem [resolvable:$true] %s13
      %19 = dma.hbm_to_vmem [thread:$0]  %s12, 1024, %s14, [#allocation3], 128, 128, 8
    $region5: #{_miner_device.2} parent=1 // pred_fallthru
      _
    // Predicated region
    $region6: #{_miner_device.2} parent=1 // pred_check
      _
    $region7: #{_miner_device.2} parent=1 // pred_check_branch
      %21 = sbr.rel (0) target = $region9
    $region8: #{_miner_device.2} parent=1 // pred_region
      %23 = dma.done [#allocation3], 1024
    $region9: #{_miner_device.2} parent=1 // pred_fallthru
      _
    %v24 = vld [vmem:[#allocation2] sm:$0xff]
    %v25 = vld [vmem:[#allocation2 + $0x8] sm:$0xff]
    %v26 = vld [vmem:[#allocation2 + $0x10] sm:$0xff]
    %v27 = vld [vmem:[#allocation2 + $0x18] sm:$0xff]
    %v28 = vld [vmem:[#allocation2 + $0x20] sm:$0xff]
    %v29 = vld [vmem:[#allocation2 + $0x28] sm:$0xff]
    %v30 = vld [vmem:[#allocation2 + $0x30] sm:$0xff]
    %v31 = vld [vmem:[#allocation2 + $0x38] sm:$0xff]
    %v32 = vmul.f32 %v24, %v24
    %v33 = vmul.f32 %v25, %v25
    %v34 = vmul.f32 %v26, %v26
    %v35 = vmul.f32 %v27, %v27
    %v36 = vmul.f32 %v28, %v28
    %v37 = vmul.f32 %v29, %v29
    %v38 = vmul.f32 %v30, %v30
    %v39 = vmul.f32 %v31, %v31
    %40 = vadd.xlane.f32.xlu0 %v32
    %v41 = vpop.xlane.xlu0 %40
    %42 = vadd.xlane.f32.xlu0 %v33
    %v43 = vpop.xlane.xlu0 %42
    %44 = vadd.xlane.f32.xlu0 %v34
    %v45 = vpop.xlane.xlu0 %44
    %46 = vadd.xlane.f32.xlu0 %v35
    %v47 = vpop.xlane.xlu0 %46
    %48 = vadd.xlane.f32.xlu0 %v36
    %v49 = vpop.xlane.xlu0 %48
    %50 = vadd.xlane.f32.xlu0 %v37
    %v51 = vpop.xlane.xlu0 %50
    %52 = vadd.xlane.f32.xlu0 %v38
    %v53 = vpop.xlane.xlu0 %52
    %54 = vadd.xlane.f32.xlu0 %v39
    %v55 = vpop.xlane.xlu0 %54
    %v56 = vadd.f32 %v41, 1e-24
    %v57 = vadd.f32 %v43, 1e-24
    %v58 = vadd.f32 %v45, 1e-24
    %v59 = vadd.f32 %v47, 1e-24
    %v60 = vadd.f32 %v49, 1e-24
    %v61 = vadd.f32 %v51, 1e-24
    %v62 = vadd.f32 %v53, 1e-24
    %v63 = vadd.f32 %v55, 1e-24
    %v64 = vrsqrt.pop %v56
    %v65 = vmul.f32 %v64, %v56
    %v66 = vmul.f32 %v65, %v64
    %v67 = vmul.f32 0.5, %v66
    %v68 = vsub.f32 1.5, %v67
    %v69 = vmul.f32 %v64, %v68
    %vm70 = vweird.f32 %v56
    %vm71 = vweird.f32 %v64
    %vm72 = vmor %vm70, %vm71
    %v73 = vsel %vm72, %v64, %v69
    %v74 = vrsqrt.pop %v57
    %v75 = vmul.f32 %v74, %v57
    %v76 = vmul.f32 %v75, %v74
    %v77 = vmul.f32 0.5, %v76
    %v78 = vsub.f32 1.5, %v77
    %v79 = vmul.f32 %v74, %v78
    %vm80 = vweird.f32 %v57
    %vm81 = vweird.f32 %v74
    %vm82 = vmor %vm80, %vm81
    %v83 = vsel %vm82, %v74, %v79
    %v84 = vrsqrt.pop %v58
    %v85 = vmul.f32 %v84, %v58
    %v86 = vmul.f32 %v85, %v84
    %v87 = vmul.f32 0.5, %v86
    %v88 = vsub.f32 1.5, %v87
    %v89 = vmul.f32 %v84, %v88
    %vm90 = vweird.f32 %v58
    %vm91 = vweird.f32 %v84
    %vm92 = vmor %vm90, %vm91
    %v93 = vsel %vm92, %v84, %v89
    %v94 = vrsqrt.pop %v59
    %v95 = vmul.f32 %v94, %v59
    %v96 = vmul.f32 %v95, %v94
    %v97 = vmul.f32 0.5, %v96
    %v98 = vsub.f32 1.5, %v97
    %v99 = vmul.f32 %v94, %v98
    %vm100 = vweird.f32 %v59
    %vm101 = vweird.f32 %v94
    %vm102 = vmor %vm100, %vm101
    %v103 = vsel %vm102, %v94, %v99
    %v104 = vrsqrt.pop %v60
    %v105 = vmul.f32 %v104, %v60
    %v106 = vmul.f32 %v105, %v104
    %v107 = vmul.f32 0.5, %v106
    %v108 = vsub.f32 1.5, %v107
    %v109 = vmul.f32 %v104, %v108
    %vm110 = vweird.f32 %v60
    %vm111 = vweird.f32 %v104
    %vm112 = vmor %vm110, %vm111
    %v113 = vsel %vm112, %v104, %v109
    %v114 = vrsqrt.pop %v61
    %v115 = vmul.f32 %v114, %v61
    %v116 = vmul.f32 %v115, %v114
    %v117 = vmul.f32 0.5, %v116
    %v118 = vsub.f32 1.5, %v117
    %v119 = vmul.f32 %v114, %v118
    %vm120 = vweird.f32 %v61
    %vm121 = vweird.f32 %v114
    %vm122 = vmor %vm120, %vm121
    %v123 = vsel %vm122, %v114, %v119
    %v124 = vrsqrt.pop %v62
    %v125 = vmul.f32 %v124, %v62
    %v126 = vmul.f32 %v125, %v124
    %v127 = vmul.f32 0.5, %v126
    %v128 = vsub.f32 1.5, %v127
    %v129 = vmul.f32 %v124, %v128
    %vm130 = vweird.f32 %v62
    %vm131 = vweird.f32 %v124
    %vm132 = vmor %vm130, %vm131
    %v133 = vsel %vm132, %v124, %v129
    %v134 = vrsqrt.pop %v63
    %v135 = vmul.f32 %v134, %v63
    %v136 = vmul.f32 %v135, %v134
    %v137 = vmul.f32 0.5, %v136
    %v138 = vsub.f32 1.5, %v137
    %v139 = vmul.f32 %v134, %v138
    %vm140 = vweird.f32 %v63
    %vm141 = vweird.f32 %v134
    %vm142 = vmor %vm140, %vm141
    %v143 = vsel %vm142, %v134, %v139
    %v144 = vmul.f32 %v24, %v73
    %v145 = vmul.f32 %v25, %v83
    %v146 = vmul.f32 %v26, %v93
    %v147 = vmul.f32 %v27, %v103
    %v148 = vmul.f32 %v28, %v113
    %v149 = vmul.f32 %v29, %v123
    %v150 = vmul.f32 %v30, %v133
    %v151 = vmul.f32 %v31, %v143
    %v152 = vpack.c.bf16 %v144, %v144
    %v153 = vpack.c.bf16 %v145, %v145
    %v154 = vpack.c.bf16 %v146, %v146
    %v155 = vpack.c.bf16 %v147, %v147
    %v156 = vpack.c.bf16 %v148, %v148
    %v157 = vpack.c.bf16 %v149, %v149
    %v158 = vpack.c.bf16 %v150, %v150
    %v159 = vpack.c.bf16 %v151, %v151
    %160 = vst [vmem:[%s1] sm:$0xf] %v152
    %161 = vst [vmem:[%s1 + $0x4] sm:$0xf] %v153
    %162 = vst [vmem:[%s1 + $0x8] sm:$0xf] %v154
    %163 = vst [vmem:[%s1 + $0xc] sm:$0xf] %v155
    %164 = vst [vmem:[%s1 + $0x10] sm:$0xf] %v156
    %165 = vst [vmem:[%s1 + $0x14] sm:$0xf] %v157
    %166 = vst [vmem:[%s1 + $0x18] sm:$0xf] %v158
    %167 = vst [vmem:[%s1 + $0x1c] sm:$0xf] %v159
    // Predicated region
    $region10: #{_miner_device.2} parent=1 // pred_check
      _
    $region11: #{_miner_device.2} parent=1 // pred_check_branch
      %169 = sbr.rel (0) target = $region13
    $region12: #{_miner_device.2} parent=1 // pred_region
      _
    $region13: #{_miner_device.2} parent=1 // pred_fallthru
      _
    // Predicated region
    $region14: #{_miner_device.2} parent=1 // pred_check
      _
    $region15: #{_miner_device.2} parent=1 // pred_check_branch
      %171 = sbr.rel (0) target = $region17
    $region16: #{_miner_device.2} parent=1 // pred_region
      _
    $region17: #{_miner_device.2} parent=1 // pred_fallthru
      _
    %172 = vsyncpa [#allocation3], 1

// kernel: _miner_device.3
$region0: #{_miner_device.3}
  #allocation0 [shape = 'u32[]', space=smem, size = 0x4, offset = 0x4, fixed_abs, tag = 'smem constant byte address 0x4 - core index']
  #allocation1 [shape = 'u32[72,128]{1,0:T(1,128)}', space=vmem, size = 0x9000, scoped, tag = 'internal scratch']
  #allocation2 [shape = 'f32[32,1]{1,0:T(8,128)}', space=vmem, size = 0x4000, scoped, tag = 'scratch operand']
  #allocation3 [shape = 'f32[32,1]{1,0:T(8,128)}', space=vmem, size = 0x4000, scoped, tag = 'scratch operand']
  #allocation4 [shape = 'f32[32,1]{1,0:T(8,128)}', space=vmem, size = 0x4000, scoped, tag = 'scratch operand']
  %s0 = inlined_call_operand.vmem [shape: bf16[64,128], index: 0, kind: input, shape index: {}, may-alias: {0,1}]
  %s1 = inlined_call_operand.vmem [shape: bf16[64,128], index: 1, kind: input, shape index: {}, may-alias: {0,1}]
  %s2 = inlined_call_operand.vmem [shape: s8[64,64], index: 2, kind: input, shape index: {}]
  %s3 = inlined_call_operand.hbm [shape: bf16[64,64], index: 3, kind: output, shape index: {0}]
  %s4 = inlined_call_operand.hbm [shape: f32[64,128], index: 4, kind: output, shape index: {1}]
  %5 = xla_tuple %s3, %s4
  %s6 = sld [smem:[#allocation0]]
  $region61: #{_miner_device.3} parent=0
    _
  %s8 = ssub.s32 1, %s6
  %s9 = scalar_select 0, %s8, %s6
  $region1: #{_miner_device.3} parent=0
    #allocation5 [shape = 'u8[16384]{0}', space=vmem, size = 0x4000, scoped, tag = 'output window, operand 0']
    #allocation6 [shape = 's32[2]{0}', space=sflag, size = 0x8, scoped, tag = 'scoped memory for _miner_device.3']
    #allocation7 [shape = 'u8[32768]{0}', space=vmem, size = 0x8000, scoped, tag = 'output window, operand 1']
    #allocation8 [shape = 's32[2]{0}', space=sflag, size = 0x8, scoped, tag = 'scoped memory for _miner_device.3']
    %10 = vsyncpa [#allocation6], 0
    %s11 = scalar_lea.sflag [#allocation6], 1
    %12 = vsyncpa %s11, 0
    %13 = vsyncpa [#allocation8], 0
    %s14 = scalar_lea.sflag [#allocation8], 1
    %15 = vsyncpa %s14, 0
    loop: start=0, step=1, limit=4
    $region2: #{_miner_device.3} parent=1 // loop_pre_header
      _
    $region3: #{_miner_device.3} parent=1 // loop_header
      %s17 = sphi 0, %s21
      %p18 = scmp.ge.s32.totalorder %s17, 4
      %s24 = sphi 0, %s36
      %s25 = sphi 0, %s32
      %s26 = sphi 0, %s24
      %s27 = sphi 0, %s25
      %s28 = sphi 0, %s26
      %s29 = sphi 0, %s27
      %s39 = sphi 0, %s41
      %s42 = sphi 0, %s39
      %s43 = sphi 0, %s42
      %s59 = sphi 0, %s43
      %s65 = sphi 0, %s67
      %s68 = sphi 0, %s65
      %s69 = sphi 0, %s68
      %s85 = sphi 0, %s69
      %s93 = sphi 0, %s95
      %s96 = sphi 0, %s93
      %s97 = sphi 0, %s96
      %s113 = sphi 0, %s97
      %s121 = sphi 0, %s123
      %s124 = sphi 0, %s121
      %s125 = sphi 0, %s124
      %s141 = sphi 0, %s125
      %s147 = sphi 0, %s149
      %s150 = sphi 0, %s147
      %s151 = sphi 0, %s150
      %s167 = sphi 0, %s151
    $region4: #{_miner_device.3} parent=1 // loop_header_branch
      %20 = sbr.rel (%p18) target = $region8
    $region5: #{_miner_device.3} parent=1 // loop_body
      %s22 = ssub.s32 %s17, 1
      %s23 = ssub.s32 %s17, 2
      %s30 = sadd.s32 1, %s25
      %p31 = scmp.ge.s32.totalorder %s30, 1
      %s32 = scalar_select %p31, 0, %s30
      %s33 = sadd.s32 1, %s24
      %s34 = scalar_select %p31, %s33, %s24
      %p35 = scmp.ge.s32.totalorder %s34, 2
      %s36 = scalar_select %p35, 0, %s34
      %s37 = ssub.s32 %s24, %s36
      %p38 = scmp.eq.s32.totalorder %s37, 0
      %s40 = sadd.s32 %s39, 1
      %s41 = scalar_select %p38, %s39, %s40
      %p44 = pneg %p38
      %p45 = scmp.eq.s32.totalorder %s17, 1
      %p46 = por %p44, %p45
      %p47 = scmp.ne.s32.totalorder %s39, %s42
      %p48 = scmp.eq.s32.totalorder %s17, 0
      %p49 = por %p47, %p48
      %p50 = scmp.ne.s32.totalorder %s39, %s42
      %p51 = scmp.eq.s32.totalorder %s22, 1
      %p52 = por %p50, %p51
      %p53 = scmp.ne.s32.totalorder %s42, %s43
      %p54 = scmp.eq.s32.totalorder %s22, 0
      %p55 = por %p53, %p54
      %p56 = scmp.ne.s32.totalorder %s42, %s43
      %p57 = scmp.eq.s32.totalorder %s23, 1
      %p58 = por %p56, %p57
      %p60 = scmp.ne.s32.totalorder %s43, %s59
      %p61 = scmp.eq.s32.totalorder %s23, 0
      %p62 = por %p60, %p61
      %s63 = ssub.s32 %s25, %s32
      %p64 = scmp.eq.s32.totalorder %s63, 0
      %s66 = sadd.s32 %s65, 1
      %s67 = scalar_select %p64, %s65, %s66
      %p70 = pneg %p64
      %p71 = scmp.eq.s32.totalorder %s17, 1
      %p72 = por %p70, %p71
      %p73 = scmp.ne.s32.totalorder %s65, %s68
      %p74 = scmp.eq.s32.totalorder %s17, 0
      %p75 = por %p73, %p74
      %p76 = scmp.ne.s32.totalorder %s65, %s68
      %p77 = scmp.eq.s32.totalorder %s22, 1
      %p78 = por %p76, %p77
      %p79 = scmp.ne.s32.totalorder %s68, %s69
      %p80 = scmp.eq.s32.totalorder %s22, 0
      %p81 = por %p79, %p80
      %p82 = scmp.ne.s32.totalorder %s68, %s69
      %p83 = scmp.eq.s32.totalorder %s23, 1
      %p84 = por %p82, %p83
      %p86 = scmp.ne.s32.totalorder %s69, %s85
      %p87 = scmp.eq.s32.totalorder %s23, 0
      %p88 = por %p86, %p87
      %s89 = ssub.s32 %s24, %s36
      %s90 = ssub.s32 %s25, %s32
      %s91 = sor.u32 %s89, %s90
      %p92 = scmp.eq.s32.totalorder %s91, 0
      %s94 = sadd.s32 %s93, 1
      %s95 = scalar_select %p92, %s93, %s94
      %p98 = pneg %p92
      %p99 = scmp.eq.s32.totalorder %s17, 1
      %p100 = por %p98, %p99
      %p101 = scmp.ne.s32.totalorder %s93, %s96
      %p102 = scmp.eq.s32.totalorder %s17, 0
      %p103 = por %p101, %p102
      %p104 = scmp.ne.s32.totalorder %s93, %s96
      %p105 = scmp.eq.s32.totalorder %s22, 1
      %p106 = por %p104, %p105
      %p107 = scmp.ne.s32.totalorder %s96, %s97
      %p108 = scmp.eq.s32.totalorder %s22, 0
      %p109 = por %p107, %p108
      %p110 = scmp.ne.s32.totalorder %s96, %s97
      %p111 = scmp.eq.s32.totalorder %s23, 1
      %p112 = por %p110, %p111
      %p114 = scmp.ne.s32.totalorder %s97, %s113
      %p115 = scmp.eq.s32.totalorder %s23, 0
      %p116 = por %p114, %p115
      %s117 = ssub.s32 %s24, %s36
      %s118 = ssub.s32 %s25, %s32
      %s119 = sor.u32 %s117, %s118
      %p120 = scmp.eq.s32.totalorder %s119, 0
      %s122 = sadd.s32 %s121, 1
      %s123 = scalar_select %p120, %s121, %s122
      %p126 = pneg %p120
      %p127 = scmp.eq.s32.totalorder %s17, 1
      %p128 = por %p126, %p127
      %p129 = scmp.ne.s32.totalorder %s121, %s124
      %p130 = scmp.eq.s32.totalorder %s17, 0
      %p131 = por %p129, %p130
      %p132 = scmp.ne.s32.totalorder %s121, %s124
      %p133 = scmp.eq.s32.totalorder %s22, 1
      %p134 = por %p132, %p133
      %p135 = scmp.ne.s32.totalorder %s124, %s125
      %p136 = scmp.eq.s32.totalorder %s22, 0
      %p137 = por %p135, %p136
      %p138 = scmp.ne.s32.totalorder %s124, %s125
      %p139 = scmp.eq.s32.totalorder %s23, 1
      %p140 = por %p138, %p139
      %p142 = scmp.ne.s32.totalorder %s125, %s141
      %p143 = scmp.eq.s32.totalorder %s23, 0
      %p144 = por %p142, %p143
      %s145 = ssub.s32 %s24, %s36
      %p146 = scmp.eq.s32.totalorder %s145, 0
      %s148 = sadd.s32 %s147, 1
      %s149 = scalar_select %p146, %s147, %s148
      %p152 = pneg %p146
      %p153 = scmp.eq.s32.totalorder %s17, 1
      %p154 = por %p152, %p153
      %p155 = scmp.ne.s32.totalorder %s147, %s150
      %p156 = scmp.eq.s32.totalorder %s17, 0
      %p157 = por %p155, %p156
      %p158 = scmp.ne.s32.totalorder %s147, %s150
      %p159 = scmp.eq.s32.totalorder %s22, 1
      %p160 = por %p158, %p159
      %p161 = scmp.ne.s32.totalorder %s150, %s151
      %p162 = scmp.eq.s32.totalorder %s22, 0
      %p163 = por %p161, %p162
      %p164 = scmp.ne.s32.totalorder %s150, %s151
      %p165 = scmp.eq.s32.totalorder %s23, 1
      %p166 = por %p164, %p165
      %p168 = scmp.ne.s32.totalorder %s151, %s167
      %p169 = scmp.eq.s32.totalorder %s23, 0
      %p170 = por %p168, %p169
      %p171 = scmp.le.s32.totalorder 1, %s17
      %p172 = scmp.lt.s32.totalorder %s17, 3
      %p173 = pnand %p171, %p172
      %p174 = pneg %p173
      // Predicated region
      $region9: #{_miner_device.3} parent=5 // pred_check
        _
      $region10: #{_miner_device.3} parent=5 // pred_check_branch
        %176 = sbr.rel (%p173) target = $region12
      $region11: #{_miner_device.3} parent=5 // pred_region
        %s177 = ssub.s32 %s17, 1
        // Predicated region
        $region13: #{_miner_device.3} parent=11 // pred_check
          %p178 = pneg %p81
        $region14: #{_miner_device.3} parent=11 // pred_check_branch
          %180 = sbr.rel (%p178) target = $region16
        $region15: #{_miner_device.3} parent=11 // pred_region
          %s181 = smul.u32 8, %s27
          %p182 = scmp.lt.s32.totalorder %s181, 7
          %s183 = scalar_select %p182, %s181, 7
          %s184 = smul.addr %s183, 4
          %s185 = scalar_lea.vmem %s1, %s184
          %s186 = smul.u32 8, %s27
        $region16: #{_miner_device.3} parent=11 // pred_fallthru
          _
      $region12: #{_miner_device.3} parent=5 // pred_fallthru
        _
      %p187 = scmp.lt.s32.totalorder %s17, 2
      // Predicated region
      $region17: #{_miner_device.3} parent=5 // pred_check
        %p188 = pneg %p187
      $region18: #{_miner_device.3} parent=5 // pred_check_branch
        %190 = sbr.rel (%p188) target = $region20
      $region19: #{_miner_device.3} parent=5 // pred_region
        // Predicated region
        $region21: #{_miner_device.3} parent=19 // pred_check
          %p191 = pneg %p49
        $region22: #{_miner_device.3} parent=19 // pred_check_branch
          %193 = sbr.rel (%p191) target = $region24
        $region23: #{_miner_device.3} parent=19 // pred_region
          %s194 = smul.u32 4, %s24
          %p195 = scmp.lt.s32.totalorder %s194, 7
          %s196 = scalar_select %p195, %s194, 7
          %s197 = smul.addr %s196, 4
          %s198 = scalar_lea.vmem %s0, %s197
          %s199 = smul.u32 4, %s24
        $region24: #{_miner_device.3} parent=19 // pred_fallthru
          _
        // Predicated region
        $region25: #{_miner_device.3} parent=19 // pred_check
          %p200 = pneg %p103
        $region26: #{_miner_device.3} parent=19 // pred_check_branch
          %202 = sbr.rel (%p200) target = $region28
        $region27: #{_miner_device.3} parent=19 // pred_region
          %p203 = scmp.lt.s32.totalorder %s24, 1
          %s204 = scalar_select %p203, %s24, 1
          %p205 = scmp.lt.s32.totalorder %s25, 0
          %s206 = scalar_select %p205, %s25, 0
          %s207 = sadd.s32 %s206, %s204
          %s208 = smul.addr %s207, 8
          %s209 = scalar_lea.vmem %s2, %s208
        $region28: #{_miner_device.3} parent=19 // pred_fallthru
          _
      $region20: #{_miner_device.3} parent=5 // pred_fallthru
        _
      %p210 = scmp.le.s32.totalorder 1, %s17
      %p211 = scmp.lt.s32.totalorder %s17, 3
      %p212 = pnand %p210, %p211
      %p213 = pneg %p212
      // Predicated region
      $region29: #{_miner_device.3} parent=5 // pred_check
        _
      $region30: #{_miner_device.3} parent=5 // pred_check_branch
        %215 = sbr.rel (%p212) target = $region32
      $region31: #{_miner_device.3} parent=5 // pred_region
        %s216 = ssub.s32 %s17, 1
        %s217 = smul.u32 4, %s26
        %p218 = scmp.lt.s32.totalorder %s217, 7
        %s219 = scalar_select %p218, %s217, 7
        %s220 = smul.addr %s219, 4
        %s221 = scalar_lea.vmem %s0, %s220
        %p222 = pneg %p55
        %p223 = pneg %p52
        %s224 = smul.u32 8, %s27
        %p225 = scmp.lt.s32.totalorder %s224, 7
        %s226 = scalar_select %p225, %s224, 7
        %s227 = smul.addr %s226, 4
        %s228 = scalar_lea.vmem %s1, %s227
        %p229 = pneg %p81
        %p230 = pneg %p78
        %p231 = scmp.lt.s32.totalorder %s26, 1
        %s232 = scalar_select %p231, %s26, 1
        %p233 = scmp.lt.s32.totalorder %s27, 0
        %s234 = scalar_select %p233, %s27, 0
        %s235 = sadd.s32 %s234, %s232
        %s236 = smul.addr %s235, 8
        %s237 = scalar_lea.vmem %s2, %s236
        %p238 = pneg %p109
        %p239 = pneg %p106
        %p240 = pneg %p137
        %p241 = pneg %p134
        %s242 = sand.u32 %s124, 1
        %s243 = scalar_lea.sflag [#allocation6], %s242
        %s244 = sand.u32 %s124, 1
        %s245 = smul.addr %s244, 16
        %s246 = scalar_lea.vmem [#allocation5], %s245
        %p247 = pneg %p163
        %p248 = pneg %p160
        %s249 = sand.u32 %s150, 1
        %s250 = scalar_lea.sflag [#allocation8], %s249
        %s251 = sand.u32 %s150, 1
        %s252 = smul.addr %s251, 32
        %s253 = scalar_lea.vmem [#allocation7], %s252
        %s254 = smul.u32 4, %s26
        %p255 = scmp.lt.s32.totalorder %s254, 7
        %s256 = scalar_select %p255, %s254, 7
        %s257 = smul.addr %s256, 4
        %s258 = scalar_lea.vmem %s0, %s257
        %s259 = smul.u32 4, %s26
        %s260 = smul.u32 8, %s27
        %p261 = scmp.lt.s32.totalorder %s260, 7
        %s262 = scalar_select %p261, %s260, 7
        %s263 = smul.addr %s262, 4
        %s264 = scalar_lea.vmem %s1, %s263
        %s265 = smul.u32 8, %s27
        %p266 = scmp.lt.s32.totalorder %s26, 1
        %s267 = scalar_select %p266, %s26, 1
        %p268 = scmp.lt.s32.totalorder %s27, 0
        %s269 = scalar_select %p268, %s27, 0
        %s270 = sadd.s32 %s269, %s267
        %s271 = smul.addr %s270, 8
        %s272 = scalar_lea.vmem %s2, %s271
        %s273 = smul.u32 4, %s26
        %s274 = smul.u32 4, %s26
        %p276 = scmp.eq.s32.totalorder %s27, 0
        // Predicated region
        $region33: #{_miner_device.3} parent=31 // pred_check
          %p277 = pneg %p276
        $region34: #{_miner_device.3} parent=31 // pred_check_branch
          %279 = sbr.rel (%p277) target = $region36
        $region35: #{_miner_device.3} parent=31 // pred_region
          %vm280 = vcmask 7168
          %281 = vst.msk [vmem:[#allocation2] sm:$0xff] %vm280, 0.0
          %282 = vst.msk [vmem:[#allocation2 + $0x8] sm:$0xff] %vm280, 0.0
          %283 = vst.msk [vmem:[#allocation2 + $0x10] sm:$0xff] %vm280, 0.0
          %284 = vst.msk [vmem:[#allocation2 + $0x18] sm:$0xff] %vm280, 0.0
          %285 = vst.msk [vmem:[#allocation3] sm:$0xff] %vm280, 0.0
          %286 = vst.msk [vmem:[#allocation3 + $0x8] sm:$0xff] %vm280, 0.0
          %287 = vst.msk [vmem:[#allocation3 + $0x10] sm:$0xff] %vm280, 0.0
          %288 = vst.msk [vmem:[#allocation3 + $0x18] sm:$0xff] %vm280, 0.0
          %289 = vst.msk [vmem:[#allocation4] sm:$0xff] %vm280, 0.0
          %290 = vst.msk [vmem:[#allocation4 + $0x8] sm:$0xff] %vm280, 0.0
          %291 = vst.msk [vmem:[#allocation4 + $0x10] sm:$0xff] %vm280, 0.0
          %292 = vst.msk [vmem:[#allocation4 + $0x18] sm:$0xff] %vm280, 0.0
        $region36: #{_miner_device.3} parent=31 // pred_fallthru
          _
        %v293 = vld [vmem:[%s258] sm:$0xf]
        %v294 = vld [vmem:[%s258 + $0x4] sm:$0xf]
        %v295 = vld [vmem:[%s258 + $0x8] sm:$0xf]
        %v296 = vld [vmem:[%s258 + $0xc] sm:$0xf]
        %v297 = vld [vmem:[%s264] sm:$0xf]
        %v298 = vld [vmem:[%s264 + $0x4] sm:$0xf]
        %v299 = vld [vmem:[%s264 + $0x8] sm:$0xf]
        %v300 = vld [vmem:[%s264 + $0xc] sm:$0xf]
        %v301 = vld [vmem:[%s264 + $0x10] sm:$0xf]
        %v302 = vld [vmem:[%s264 + $0x14] sm:$0xf]
        %v303 = vld [vmem:[%s264 + $0x18] sm:$0xf]
        %v304 = vld [vmem:[%s264 + $0x1c] sm:$0xf]
        %v309 = vunpack.c.l.b16 %v293
        %v310 = vunpack.c.l.b16 %v294
        %v311 = vunpack.c.l.b16 %v295
        %v312 = vunpack.c.l.b16 %v296
        %v313 = vpack.c.b16 %v310, %v309
        %v314 = vpack.c.b16 %v312, %v311
        %v325 = vunpack.c.l.b16 %v297
        %v326 = vunpack.c.l.b16 %v298
        %v327 = vunpack.c.l.b16 %v299
        %v328 = vunpack.c.l.b16 %v300
        %v329 = vunpack.c.l.b16 %v301
        %v330 = vunpack.c.l.b16 %v302
        %v331 = vunpack.c.l.b16 %v303
        %v332 = vunpack.c.l.b16 %v304
        %v333 = vpack.c.b16 %v326, %v325
        %v334 = vpack.c.b16 %v328, %v327
        %v335 = vpack.c.b16 %v330, %v329
        %v336 = vpack.c.b16 %v332, %v331
        %341 = vmatpush.bf16.xpose.msra.mxu0 0
        %342 = vmatpush.bf16.xpose.msra.mxu0 0
        %343 = vmatpush.bf16.xpose.msra.mxu0 0
        %344 = vmatpush.bf16.xpose.msra.mxu0 0
        %345 = vmatpush.bf16.xpose.msra.mxu0 %v336
        %346 = vmatpush.bf16.xpose.msra.mxu0 %v335
        %347 = vmatpush.bf16.xpose.msra.mxu0 %v334
        %348 = vmatpush.bf16.xpose.msra.mxu0 %v333
        %349 = vmatmul.bf16.gmra.mxu0 %v313
        %v350 = vpop.f32.mrf.mxu0
        %v351 = vadd.f32 0.0, %v350
        %v352 = vpop.f32.mrf.mxu0
        %v353 = vadd.f32 0.0, %v352
        %354 = vmatmul.bf16.gmra.mxu0 %v314
        %v355 = vpop.f32.mrf.mxu0
        %v356 = vadd.f32 0.0, %v355
        %v357 = vpop.f32.mrf.mxu0
        %v358 = vadd.f32 0.0, %v357
        %359 = vdwg.mxu0
        %v360 = vsub.f32 0.0, %v351
        %v361 = vsub.f32 0.0, %v353
        %v362 = vsub.f32 0.0, %v356
        %v363 = vsub.f32 0.0, %v358
        %v364 = vpack.c.bf16 %v360, %v360
        %v365 = vpack.c.bf16 %v361, %v361
        %v366 = vpack.c.bf16 %v362, %v362
        %v367 = vpack.c.bf16 %v363, %v363
        %vm368 = vcmask 519168
        %369 = vst.msk [vmem:[%s246] sm:$0xf] %vm368, %v364
        %370 = vst.msk [vmem:[%s246 + $0x4] sm:$0xf] %vm368, %v365
        %371 = vst.msk [vmem:[%s246 + $0x8] sm:$0xf] %vm368, %v366
        %372 = vst.msk [vmem:[%s246 + $0xc] sm:$0xf] %vm368, %v367
        %v373 = vunpack.c.l.bf16 %v364
        %v374 = vunpack.c.l.bf16 %v365
        %v375 = vunpack.c.l.bf16 %v366
        %v376 = vunpack.c.l.bf16 %v367
        %v377 = vld [vmem:[%s272] sm:$0xff]
        %v378 = vunpack.c.0.s8 %v377
        %v379 = vunpack.c.1.s8 %v377
        %v380 = vunpack.c.2.s8 %v377
        %v381 = vunpack.c.3.s8 %v377
        %v382 = vcvt.s32.f32 %v378
        %v383 = vcvt.s32.f32 %v379
        %v384 = vcvt.s32.f32 %v380
        %v385 = vcvt.s32.f32 %v381
        %v386 = vld [vmem:[#allocation2] sm:$0xff]
        %v387 = vld [vmem:[#allocation2 + $0x8] sm:$0xff]
        %v388 = vld [vmem:[#allocation2 + $0x10] sm:$0xff]
        %v389 = vld [vmem:[#allocation2 + $0x18] sm:$0xff]
        %vm390 = vcmask 523264
        %v391 = vsel %vm390, %v382, 0.0
        %392 = vadd.xlane.f32.xlu0 %v391
        %v393 = vpop.xlane.xlu0 %392
        %v394 = vsel %vm390, %v383, 0.0
        %395 = vadd.xlane.f32.xlu0 %v394
        %v396 = vpop.xlane.xlu0 %395
        %v397 = vsel %vm390, %v384, 0.0
        %398 = vadd.xlane.f32.xlu0 %v397
        %v399 = vpop.xlane.xlu0 %398
        %v400 = vsel %vm390, %v385, 0.0
        %401 = vadd.xlane.f32.xlu0 %v400
        %v402 = vpop.xlane.xlu0 %401
        %v403 = vadd.f32 %v386, %v393
        %v404 = vadd.f32 %v387, %v396
        %v405 = vadd.f32 %v388, %v399
        %v406 = vadd.f32 %v389, %v402
        %vm407 = vcmask 7168
        %408 = vst.msk [vmem:[#allocation2] sm:$0xff] %vm407, %v403
        %409 = vst.msk [vmem:[#allocation2 + $0x8] sm:$0xff] %vm407, %v404
        %410 = vst.msk [vmem:[#allocation2 + $0x10] sm:$0xff] %vm407, %v405
        %411 = vst.msk [vmem:[#allocation2 + $0x18] sm:$0xff] %vm407, %v406
        %v412 = vld [vmem:[#allocation3] sm:$0xff]
        %v413 = vld [vmem:[#allocation3 + $0x8] sm:$0xff]
        %v414 = vld [vmem:[#allocation3 + $0x10] sm:$0xff]
        %v415 = vld [vmem:[#allocation3 + $0x18] sm:$0xff]
        %v416 = vsel %vm390, %v373, 0.0
        %417 = vadd.xlane.f32.xlu0 %v416
        %v418 = vpop.xlane.xlu0 %417
        %v419 = vsel %vm390, %v374, 0.0
        %420 = vadd.xlane.f32.xlu0 %v419
        %v421 = vpop.xlane.xlu0 %420
        %v422 = vsel %vm390, %v375, 0.0
        %423 = vadd.xlane.f32.xlu0 %v422
        %v424 = vpop.xlane.xlu0 %423
        %v425 = vsel %vm390, %v376, 0.0
        %426 = vadd.xlane.f32.xlu0 %v425
        %v427 = vpop.xlane.xlu0 %426
        %v428 = vadd.f32 %v412, %v418
        %v429 = vadd.f32 %v413, %v421
        %v430 = vadd.f32 %v414, %v424
        %v431 = vadd.f32 %v415, %v427
        %432 = vst.msk [vmem:[#allocation3] sm:$0xff] %vm407, %v428
        %433 = vst.msk [vmem:[#allocation3 + $0x8] sm:$0xff] %vm407, %v429
        %434 = vst.msk [vmem:[#allocation3 + $0x10] sm:$0xff] %vm407, %v430
        %435 = vst.msk [vmem:[#allocation3 + $0x18] sm:$0xff] %vm407, %v431
        %v436 = vld [vmem:[#allocation4] sm:$0xff]
        %v437 = vld [vmem:[#allocation4 + $0x8] sm:$0xff]
        %v438 = vld [vmem:[#allocation4 + $0x10] sm:$0xff]
        %v439 = vld [vmem:[#allocation4 + $0x18] sm:$0xff]
        %v440 = vmul.f32 %v382, %v373
        %v441 = vmul.f32 %v383, %v374
        %v442 = vmul.f32 %v384, %v375
        %v443 = vmul.f32 %v385, %v376
        %v444 = vsel %vm390, %v440, 0.0
        %445 = vadd.xlane.f32.xlu0 %v444
        %v446 = vpop.xlane.xlu0 %445
        %v447 = vsel %vm390, %v441, 0.0
        %448 = vadd.xlane.f32.xlu0 %v447
        %v449 = vpop.xlane.xlu0 %448
        %v450 = vsel %vm390, %v442, 0.0
        %451 = vadd.xlane.f32.xlu0 %v450
        %v452 = vpop.xlane.xlu0 %451
        %v453 = vsel %vm390, %v443, 0.0
        %454 = vadd.xlane.f32.xlu0 %v453
        %v455 = vpop.xlane.xlu0 %454
        %v456 = vadd.f32 %v436, %v446
        %v457 = vadd.f32 %v437, %v449
        %v458 = vadd.f32 %v438, %v452
        %v459 = vadd.f32 %v439, %v455
        %460 = vst.msk [vmem:[#allocation4] sm:$0xff] %vm407, %v456
        %461 = vst.msk [vmem:[#allocation4 + $0x8] sm:$0xff] %vm407, %v457
        %462 = vst.msk [vmem:[#allocation4 + $0x10] sm:$0xff] %vm407, %v458
        %463 = vst.msk [vmem:[#allocation4 + $0x18] sm:$0xff] %vm407, %v459
        // Predicated region
        $region37: #{_miner_device.3} parent=31 // pred_check
          %p464 = pneg %p276
        $region38: #{_miner_device.3} parent=31 // pred_check_branch
          %466 = sbr.rel (%p464) target = $region40
        $region39: #{_miner_device.3} parent=31 // pred_region
          %v467 = vlaneseq
          %v468 = vand.u32 %v467, 127
          %vm469 = vcmp.eq.s32.totalorder %v468, 0
          %v470 = vld [vmem:[#allocation2] sm:$0xff]
          %v471 = vld [vmem:[#allocation2 + $0x8] sm:$0xff]
          %v472 = vld [vmem:[#allocation2 + $0x10] sm:$0xff]
          %v473 = vld [vmem:[#allocation2 + $0x18] sm:$0xff]
          %475 = vset.pattern.permute.xlu0 0
          %476 = vperm.xlu0 %475, %v470
          %v477 = vpop.permute.xlu0 %476
          %480 = vset.pattern.permute.xlu0 0
          %481 = vperm.xlu0 %480, %v471
          %v482 = vpop.permute.xlu0 %481
          %485 = vset.pattern.permute.xlu0 0
          %486 = vperm.xlu0 %485, %v472
          %v487 = vpop.permute.xlu0 %486
          %490 = vset.pattern.permute.xlu0 0
          %491 = vperm.xlu0 %490, %v473
          %v492 = vpop.permute.xlu0 %491
          %v494 = vsel %vm469, %v477, 0.0
          %v495 = vsel %vm469, %v482, 0.0
          %v496 = vsel %vm469, %v487, 0.0
          %v497 = vsel %vm469, %v492, 0.0
          %vm498 = vcmp.eq.s32.totalorder %v468, 1
          %v499 = vld [vmem:[#allocation3] sm:$0xff]
          %v500 = vld [vmem:[#allocation3 + $0x8] sm:$0xff]
          %v501 = vld [vmem:[#allocation3 + $0x10] sm:$0xff]
          %v502 = vld [vmem:[#allocation3 + $0x18] sm:$0xff]
          %504 = vset.pattern.permute.xlu0 0
          %505 = vperm.xlu0 %504, %v499
          %v506 = vpop.permute.xlu0 %505
          %509 = vset.pattern.permute.xlu0 0
          %510 = vperm.xlu0 %509, %v500
          %v511 = vpop.permute.xlu0 %510
          %514 = vset.pattern.permute.xlu0 0
          %515 = vperm.xlu0 %514, %v501
          %v516 = vpop.permute.xlu0 %515
          %519 = vset.pattern.permute.xlu0 0
          %520 = vperm.xlu0 %519, %v502
          %v521 = vpop.permute.xlu0 %520
          %v523 = vsel %vm498, %v506, 0.0
          %v524 = vsel %vm498, %v511, 0.0
          %v525 = vsel %vm498, %v516, 0.0
          %v526 = vsel %vm498, %v521, 0.0
          %v527 = vadd.f32 %v494, %v523
          %v528 = vadd.f32 %v495, %v524
          %v529 = vadd.f32 %v496, %v525
          %v530 = vadd.f32 %v497, %v526
          %vm531 = vcmp.eq.s32.totalorder %v468, 2
          %v532 = vld [vmem:[#allocation4] sm:$0xff]
          %v533 = vld [vmem:[#allocation4 + $0x8] sm:$0xff]
          %v534 = vld [vmem:[#allocation4 + $0x10] sm:$0xff]
          %v535 = vld [vmem:[#allocation4 + $0x18] sm:$0xff]
          %537 = vset.pattern.permute.xlu0 0
          %538 = vperm.xlu0 %537, %v532
          %v539 = vpop.permute.xlu0 %538
          %542 = vset.pattern.permute.xlu0 0
          %543 = vperm.xlu0 %542, %v533
          %v544 = vpop.permute.xlu0 %543
          %547 = vset.pattern.permute.xlu0 0
          %548 = vperm.xlu0 %547, %v534
          %v549 = vpop.permute.xlu0 %548
          %552 = vset.pattern.permute.xlu0 0
          %553 = vperm.xlu0 %552, %v535
          %v554 = vpop.permute.xlu0 %553
          %v556 = vsel %vm531, %v539, 0.0
          %v557 = vsel %vm531, %v544, 0.0
          %v558 = vsel %vm531, %v549, 0.0
          %v559 = vsel %vm531, %v554, 0.0
          %v560 = vadd.f32 %v527, %v556
          %v561 = vadd.f32 %v528, %v557
          %v562 = vadd.f32 %v529, %v558
          %v563 = vadd.f32 %v530, %v559
          %564 = vst [vmem:[%s253] sm:$0xff] %v560
          %565 = vst [vmem:[%s253 + $0x8] sm:$0xff] %v561
          %566 = vst [vmem:[%s253 + $0x10] sm:$0xff] %v562
          %567 = vst [vmem:[%s253 + $0x18] sm:$0xff] %v563
        $region40: #{_miner_device.3} parent=31 // pred_fallthru
          _
        %s568 = sand.u32 %s124, 1
        %s569 = scalar_lea.sflag [#allocation6], %s568
        %s570 = sand.u32 %s124, 1
        %s571 = smul.addr %s570, 16
        %s572 = scalar_lea.vmem [#allocation5], %s571
        %s573 = sand.u32 %s150, 1
        %s574 = scalar_lea.sflag [#allocation8], %s573
        %s575 = sand.u32 %s150, 1
        %s576 = smul.addr %s575, 32
        %s577 = scalar_lea.vmem [#allocation7], %s576
        // Predicated region
        $region41: #{_miner_device.3} parent=31 // pred_check
          %p578 = pneg %p134
        $region42: #{_miner_device.3} parent=31 // pred_check_branch
          %580 = sbr.rel (%p578) target = $region44
        $region43: #{_miner_device.3} parent=31 // pred_region
          %s581 = smul.u32 4, %s26
          %583 = vsyncadd %s569, 0
          %s584 = sadd.s32 %s27, %s581
          %s585 = smul.addr %s584, 4
          %s586 = scalar_lea.hbm %s3, %s585
          %s587 = sshll.u32 %s572, 4
          %s588 = int_to_ptr.vmem [resolvable:$true] %s587
          %s589 = sshll.u32 %s586, 4
          %s590 = int_to_ptr.hbm [resolvable:$true] %s589
          %595 = dma.vmem_to_hbm [thread:$0]  %s588, 256, %s590, %s569, 64, 64, 4
        $region44: #{_miner_device.3} parent=31 // pred_fallthru
          _
        // Predicated region
        $region45: #{_miner_device.3} parent=31 // pred_check
          %p596 = pneg %p160
        $region46: #{_miner_device.3} parent=31 // pred_check_branch
          %598 = sbr.rel (%p596) target = $region48
        $region47: #{_miner_device.3} parent=31 // pred_region
          %s599 = smul.u32 4, %s26
          %601 = vsyncadd %s574, 0
          %s602 = smul.addr %s599, 8
          %s603 = scalar_lea.hbm %s4, %s602
          %s604 = sshll.u32 %s577, 4
          %s605 = int_to_ptr.vmem [resolvable:$true] %s604
          %s606 = sshll.u32 %s603, 4
          %s607 = int_to_ptr.hbm [resolvable:$true] %s606
          %612 = dma.vmem_to_hbm [thread:$0]  %s605, 512, %s607, %s574, 128, 128, 8
        $region48: #{_miner_device.3} parent=31 // pred_fallthru
          _
      $region32: #{_miner_device.3} parent=5 // pred_fallthru
        _
      %p613 = scmp.le.s32.totalorder 2, %s17
      // Predicated region
      $region49: #{_miner_device.3} parent=5 // pred_check
        %p614 = pneg %p613
      $region50: #{_miner_device.3} parent=5 // pred_check_branch
        %616 = sbr.rel (%p614) target = $region52
      $region51: #{_miner_device.3} parent=5 // pred_region
        %s617 = ssub.s32 %s17, 2
        // Predicated region
        $region53: #{_miner_device.3} parent=51 // pred_check
          %p618 = pneg %p140
        $region54: #{_miner_device.3} parent=51 // pred_check_branch
          %620 = sbr.rel (%p618) target = $region56
        $region55: #{_miner_device.3} parent=51 // pred_region
          %s621 = sand.u32 %s125, 1
          %s622 = scalar_lea.sflag [#allocation6], %s621
          %s623 = sand.u32 %s125, 1
          %s624 = smul.addr %s623, 16
          %s625 = scalar_lea.vmem [#allocation5], %s624
          %627 = dma.done %s622, 256
        $region56: #{_miner_device.3} parent=51 // pred_fallthru
          _
        // Predicated region
        $region57: #{_miner_device.3} parent=51 // pred_check
          %p628 = pneg %p166
        $region58: #{_miner_device.3} parent=51 // pred_check_branch
          %630 = sbr.rel (%p628) target = $region60
        $region59: #{_miner_device.3} parent=51 // pred_region
          %s631 = sand.u32 %s151, 1
          %s632 = scalar_lea.sflag [#allocation8], %s631
          %s633 = sand.u32 %s151, 1
          %s634 = smul.addr %s633, 32
          %s635 = scalar_lea.vmem [#allocation7], %s634
          %637 = dma.done %s632, 512
        $region60: #{_miner_device.3} parent=51 // pred_fallthru
          _
      $region52: #{_miner_device.3} parent=5 // pred_fallthru
        _
    $region6: #{_miner_device.3} parent=1 // loop_footer
      %s21 = sadd.s32 1, %s17
    $region7: #{_miner_device.3} parent=1 // loop_footer_branch
      %16 = sbr.rel target = $region3
    $region8: #{_miner_device.3} parent=1 // loop_exit
      _
    %638 = vsyncpa [#allocation6], 1
    %s639 = scalar_lea.sflag [#allocation6], 1
    %640 = vsyncpa %s639, 1
    %641 = vsyncpa [#allocation8], 1
    %s642 = scalar_lea.sflag [#allocation8], 1
    %643 = vsyncpa %s642, 1

</llo_original>
